<compile_context>
chip_gen: v5e
topology: v5e:2x2
jax: 0.10.0
libtpu: 0.0.40
codegen_flags: <defaults>
</compile_context>

<pallas_src>
import functools

import jax
import jax.numpy as jnp
from jax import lax
from jax.experimental import pallas as pl
from jax.experimental.pallas import tpu as pltpu

EPS = 1e-5
_VMEM_LIMIT = 48 * 1024 * 1024   # fits every generation (v7x physical = 64 MiB)


def _sigmoid(z, approx):
    # exp on the EUP; with approx=True the reciprocal also rides the EUP slot.
    return pl.reciprocal(1.0 + jnp.exp(-z), approx=approx)


# --------------- pass 1: build x_sum + cross-tile channel-gate reduction ----

def _accumulate_and_gate(x_sum, t, w_c1_ref, w_c2_ref,
                         xsum_out_ref, g2_out_ref, pooled_ref, approx):
    xsum_out_ref[0] = x_sum.astype(xsum_out_ref.dtype)

    @pl.when(t == 0)
    def _():
        pooled_ref[...] = jnp.zeros_like(pooled_ref)

    pooled_ref[...] += jnp.sum(x_sum, axis=0, keepdims=True)

    @pl.when(t == pl.num_programs(1) - 1)
    def _():
        # 1/HW is folded into w_c1, so the accumulated *sum* acts as the mean.
        h = jnp.maximum(jnp.dot(pooled_ref[...], w_c1_ref[...],
                                preferred_element_type=jnp.float32), 0.0)
        g2 = _sigmoid(jnp.dot(h, w_c2_ref[...],
                              preferred_element_type=jnp.float32), approx)
        g2_out_ref[0] = g2.astype(g2_out_ref.dtype)


def mfu_sum_side_kernel(x_taps_ref, skip_ref, side_ref,
                        w_str_ref, w_1x1_ref, bn1_scale_ref, bn1_bias_ref,
                        w_c1_ref, w_c2_ref,
                        xsum_out_ref, g2_out_ref, pooled_ref, *, approx):
    t = pl.program_id(1)
    # conv1x1 + BN(inference) + ReLU  (outer F.relu is a no-op after ReLU)
    s = jnp.dot(skip_ref[0], w_1x1_ref[...], preferred_element_type=jnp.float32)
    s = jnp.maximum(s * bn1_scale_ref[...] + bn1_bias_ref[...], 0.0)
    # convstr: single fused matmul, K = 9*C (taps concatenated on the lane axis)
    xc = jnp.dot(x_taps_ref[0], w_str_ref[...], preferred_element_type=jnp.float32)
    x_sum = xc + side_ref[0].astype(jnp.float32) + s
    _accumulate_and_gate(x_sum, t, w_c1_ref, w_c2_ref,
                         xsum_out_ref, g2_out_ref, pooled_ref, approx)


def mfu_sum_noside_kernel(x_ref, skip_ref,
                          w_1x1_ref, bn1_scale_ref, bn1_bias_ref,
                          w_c1_ref, w_c2_ref,
                          xsum_out_ref, g2_out_ref, pooled_ref, *, approx):
    t = pl.program_id(1)
    s = jnp.dot(skip_ref[0], w_1x1_ref[...], preferred_element_type=jnp.float32)
    s = jnp.maximum(s * bn1_scale_ref[...] + bn1_bias_ref[...], 0.0)
    x_sum = x_ref[0].astype(jnp.float32) + s
    _accumulate_and_gate(x_sum, t, w_c1_ref, w_c2_ref,
                         xsum_out_ref, g2_out_ref, pooled_ref, approx)


# --------------- pass 2: apply spatial + channel gates ----------------------

def mfu_apply_kernel(xsum_ref, g2_ref, w_sg_ref, sg_bias_ref, out_ref, *, approx):
    x_sum = xsum_ref[0].astype(jnp.float32)                       # (T, C)
    # spatial gate sU as VPU multiply + lane reduce (no N=1 MXU matmul)
    g1 = _sigmoid(jnp.sum(x_sum * w_sg_ref[...], axis=-1, keepdims=True)
                  + sg_bias_ref[0, 0], approx)                    # (T, 1)
    out_ref[0] = ((g1 + g2_ref[0]) * x_sum).astype(out_ref.dtype)


# --------------- wrapper ----------------------------------------------------

def _pick_tile_hw(hw, max_tile=1024):
    if hw <= max_tile:
        return hw
    for t in range(max_tile, 7, -1):
        if hw % t == 0 and t % 8 == 0:
            return t
    for t in range(max_tile, 0, -1):
        if hw % t == 0:
            return t
    return hw


def init_params(key, C):
    """Deterministic synthetic parameters matching MFU(out_channels=C)."""
    ks = jax.random.split(key, 9)
    p = {}
    p['w_str'] = 0.1 * jax.random.normal(ks[0], (C, C, 3, 3), jnp.float32)      # convstr, OIHW
    p['w_1x1'] = 0.1 * jax.random.normal(ks[1], (C, C, 1, 1), jnp.float32)      # conv1x1[0]
    p['gamma1'] = 1.0 + 0.1 * jax.random.normal(ks[2], (C,), jnp.float32)       # conv1x1[1] BN
    p['beta1'] = 0.1 * jax.random.normal(ks[3], (C,), jnp.float32)
    p['mean1'] = 0.1 * jax.random.normal(ks[4], (C,), jnp.float32)
    p['var1'] = jax.random.uniform(ks[5], (C,), jnp.float32, 0.5, 1.5)
    p['w_sg'] = 0.1 * jax.random.normal(ks[6], (1, C, 1, 1), jnp.float32)       # sU conv
    p['gamma_s'] = jnp.float32(1.1)                                             # sU BN (1 ch)
    p['beta_s'] = jnp.float32(-0.05)
    p['mean_s'] = jnp.float32(0.02)
    p['var_s'] = jnp.float32(0.9)
    p['w_c1'] = 0.1 * jax.random.normal(ks[7], (C // 2, C, 1, 1), jnp.float32)  # cU conv1
    p['w_c2'] = 0.1 * jax.random.normal(ks[8], (C, C // 2, 1, 1), jnp.float32)  # cU conv2
    return p


def mfu_pallas(x, skip, params, side=None, *, compute_dtype=jnp.float32,
               tile_hw=None):
    """MFU.forward(x, skip_out, side_out).  NCHW in / NCHW (f32) out."""
    B, C, Hs, Ws = skip.shape
    HW = Hs * Ws
    if tile_hw is None:
        tile_hw = _pick_tile_hw(HW)
    assert HW % tile_hw == 0, (HW, tile_hw)
    n_t = HW // tile_hw
    approx = jnp.dtype(compute_dtype) == jnp.dtype(jnp.bfloat16)

    def to_flat(a):  # NCHW -> (B, H*W, C)
        return jnp.transpose(a, (0, 2, 3, 1)).reshape(B, HW, C)

    skip_l = to_flat(skip).astype(compute_dtype)

    # ---- fold parameters (plain-JAX glue) ----
    scale1 = params['gamma1'] / jnp.sqrt(params['var1'] + EPS)
    bn1_scale = scale1.reshape(1, C)
    bn1_bias = (params['beta1'] - params['mean1'] * scale1).reshape(1, C)
    w_1x1 = params['w_1x1'][:, :, 0, 0].T.astype(compute_dtype)         # (Cin, Cout)
    scale_s = params['gamma_s'] / jnp.sqrt(params['var_s'] + EPS)
    w_sg_row = params['w_sg'][:, :, 0, 0] * scale_s                      # (1, C), BN folded
    sg_bias = (params['beta_s'] - params['mean_s'] * scale_s).reshape(1, 1)
    w_c1 = params['w_c1'][:, :, 0, 0].T / HW                             # (C, C/2), 1/HW folded
    w_c2 = params['w_c2'][:, :, 0, 0].T                                  # (C/2, C)

    cp_reduce = pltpu.CompilerParams(dimension_semantics=("parallel", "arbitrary"),
                                     vmem_limit_bytes=_VMEM_LIMIT)
    cp_apply = pltpu.CompilerParams(dimension_semantics=("parallel", "parallel"),
                                    vmem_limit_bytes=_VMEM_LIMIT)

    tile_spec = pl.BlockSpec((1, tile_hw, C), lambda b, t: (b, t, 0))
    row_spec = pl.BlockSpec((1, 1, C), lambda b, t: (b, 0, 0))
    common_w_specs = [
        pl.BlockSpec((C, C), lambda b, t: (0, 0)),          # w_1x1
        pl.BlockSpec((1, C), lambda b, t: (0, 0)),          # bn1_scale
        pl.BlockSpec((1, C), lambda b, t: (0, 0)),          # bn1_bias
        pl.BlockSpec((C, C // 2), lambda b, t: (0, 0)),     # w_c1 (1/HW folded)
        pl.BlockSpec((C // 2, C), lambda b, t: (0, 0)),     # w_c2
    ]
    sum_out_shape = (jax.ShapeDtypeStruct((B, HW, C), compute_dtype),    # x_sum
                     jax.ShapeDtypeStruct((B, 1, C), jnp.float32))       # g2 (channel gate)
    sum_out_specs = (tile_spec, row_spec)
    sum_scratch = [pltpu.VMEM((1, C), jnp.float32)]                      # pooled-sum accumulator

    if side is not None:
        # im2col for the 3x3/stride-2/pad-1 conv, concatenated on the lane axis so
        # the 9 taps become ONE matmul with K = 9*C.
        # TODO(synk): replace this glue with in-kernel strided tap reads to avoid
        # the 9x duplication of x in HBM.
        xh = jnp.transpose(x, (0, 2, 3, 1))                              # (B, Hin, Win, C)
        xp = jnp.pad(xh, ((0, 0), (1, 1), (1, 1), (0, 0)))
        taps = [xp[:, kh:kh + 2 * Hs:2, kw:kw + 2 * Ws:2, :].reshape(B, HW, C)
                for kh in range(3) for kw in range(3)]
        x_taps = jnp.concatenate(taps, axis=-1).astype(compute_dtype)    # (B, HW, 9C)
        w_str_f = jnp.transpose(params['w_str'], (2, 3, 1, 0)
                                ).reshape(9 * C, C).astype(compute_dtype)
        side_l = to_flat(side).astype(compute_dtype)

        in_specs = [pl.BlockSpec((1, tile_hw, 9 * C), lambda b, t: (b, t, 0)),
                    tile_spec, tile_spec,
                    pl.BlockSpec((9 * C, C), lambda b, t: (0, 0))] + common_w_specs
        x_sum_l, g2 = pl.pallas_call(
            functools.partial(mfu_sum_side_kernel, approx=approx),
            out_shape=sum_out_shape,
            grid=(B, n_t),
            in_specs=in_specs,
            out_specs=sum_out_specs,
            scratch_shapes=sum_scratch,
            compiler_params=cp_reduce,
        )(x_taps, skip_l, side_l, w_str_f, w_1x1, bn1_scale, bn1_bias, w_c1, w_c2)
    else:
        x_l = to_flat(x).astype(compute_dtype)
        in_specs = [tile_spec, tile_spec] + common_w_specs
        x_sum_l, g2 = pl.pallas_call(
            functools.partial(mfu_sum_noside_kernel, approx=approx),
            out_shape=sum_out_shape,
            grid=(B, n_t),
            in_specs=in_specs,
            out_specs=sum_out_specs,
            scratch_shapes=sum_scratch,
            compiler_params=cp_reduce,
        )(x_l, skip_l, w_1x1, bn1_scale, bn1_bias, w_c1, w_c2)

    out_l = pl.pallas_call(
        functools.partial(mfu_apply_kernel, approx=approx),
        out_shape=jax.ShapeDtypeStruct((B, HW, C), jnp.float32),
        grid=(B, n_t),
        in_specs=[tile_spec,                                             # x_sum
                  row_spec,                                              # g2
                  pl.BlockSpec((1, C), lambda b, t: (0, 0)),             # w_sg row (BN folded)
                  pl.BlockSpec(memory_space=pltpu.MemorySpace.SMEM)],    # sg_bias scalar
        out_specs=tile_spec,
        compiler_params=cp_apply,
    )(x_sum_l, g2, w_sg_row, sg_bias)

    return jnp.transpose(out_l.reshape(B, Hs, Ws, C), (0, 3, 1, 2))      # back to NCHW


# --------------- pure-JAX reference (eval-mode BN) ---------------------------

def mfu_ref(x, skip, params, side=None):
    dn = ('NCHW', 'OIHW', 'NCHW')
    scale1 = (params['gamma1'] / jnp.sqrt(params['var1'] + EPS))[None, :, None, None]
    bias1 = params['beta1'][None, :, None, None] - params['mean1'][None, :, None, None] * scale1
    s = lax.conv_general_dilated(skip, params['w_1x1'], (1, 1), 'VALID', dimension_numbers=dn)
    s = jnp.maximum(s * scale1 + bias1, 0.0)
    s = jnp.maximum(s, 0.0)  # extra F.relu in MFU.forward (no-op)
    if side is not None:
        xc = lax.conv_general_dilated(x, params['w_str'], (2, 2), ((1, 1), (1, 1)),
                                      dimension_numbers=dn)
        xs = xc + side + s
    else:
        xs = x + s
    g1p = lax.conv_general_dilated(xs, params['w_sg'], (1, 1), 'VALID', dimension_numbers=dn)
    scale_s = params['gamma_s'] / jnp.sqrt(params['var_s'] + EPS)
    bias_s = params['beta_s'] - params['mean_s'] * scale_s
    g1 = jax.nn.sigmoid(g1p * scale_s + bias_s)
    pooled = jnp.mean(xs, axis=(2, 3), keepdims=True)
    h = jnp.maximum(lax.conv_general_dilated(pooled, params['w_c1'], (1, 1), 'VALID',
                                             dimension_numbers=dn), 0.0)
    g2 = jax.nn.sigmoid(lax.conv_general_dilated(h, params['w_c2'], (1, 1), 'VALID',
                                                 dimension_numbers=dn))
    return g1 * xs + g2 * xs


if __name__ == "__main__":
    key = jax.random.PRNGKey(0)
    kx, kskip, kside, kx2, kp = jax.random.split(key, 5)
    B, C, H, W = 2, 8, 8, 8
    params = init_params(kp, C)

    # --- side_out path: x at 2x spatial resolution, convstr downsamples it ---
    x = jax.random.normal(kx, (B, C, 2 * H, 2 * W), jnp.float32)     # (2, 8, 16, 16)
    skip = jax.random.normal(kskip, (B, C, H, W), jnp.float32)       # (2, 8, 8, 8)
    side = jax.random.normal(kside, (B, C, H, W), jnp.float32)       # (2, 8, 8, 8)
    ref = mfu_ref(x, skip, params, side=side)

    # f32 datapath, tile_hw=16 (< HW) exercises the cross-tile pooled reduction
    out = jax.block_until_ready(mfu_pallas(x, skip, params, side=side,
                                           compute_dtype=jnp.float32, tile_hw=16))
    assert out.shape == (B, C, H, W), out.shape
    err = float(jnp.max(jnp.abs(out - ref)))
    assert err < 1e-4, f"side path (f32) mismatch: {err}"

    # --- side_out=None path: x already matches skip resolution ---
    x2 = jax.random.normal(kx2, (B, C, H, W), jnp.float32)
    out2 = jax.block_until_ready(mfu_pallas(x2, skip, params, side=None,
                                            compute_dtype=jnp.float32, tile_hw=16))
    ref2 = mfu_ref(x2, skip, params, side=None)
    err2 = float(jnp.max(jnp.abs(out2 - ref2)))
    assert err2 < 1e-4, f"no-side path (f32) mismatch: {err2}"

    # bf16 MXU operands + bf16 x_sum intermediate (fast path, looser tolerance)
    out_bf = jax.block_until_ready(mfu_pallas(x, skip, params, side=side,
                                              compute_dtype=jnp.bfloat16))
    err_bf = float(jnp.max(jnp.abs(out_bf - ref)))
    assert err_bf < 1e-1, f"side path (bf16) mismatch: {err_bf}"

    print("KERNEL_OK")
</pallas_src>

<mosaic_0001>
module attributes {stable_mosaic.version = 11 : i64} {
  func.func @mfu_sum_side_kernel(%arg0: i32, %arg1: i32, %arg2: memref<1x16x72xf32, #tpu.memory_space<vmem>>, %arg3: memref<1x16x8xf32, #tpu.memory_space<vmem>>, %arg4: memref<1x16x8xf32, #tpu.memory_space<vmem>>, %arg5: memref<72x8xf32, #tpu.memory_space<vmem>>, %arg6: memref<8x8xf32, #tpu.memory_space<vmem>>, %arg7: memref<1x8xf32, #tpu.memory_space<vmem>>, %arg8: memref<1x8xf32, #tpu.memory_space<vmem>>, %arg9: memref<8x4xf32, #tpu.memory_space<vmem>>, %arg10: memref<4x8xf32, #tpu.memory_space<vmem>>, %arg11: memref<1x16x8xf32, #tpu.memory_space<vmem>>, %arg12: memref<1x1x8xf32, #tpu.memory_space<vmem>>, %arg13: memref<1x8xf32, #tpu.memory_space<vmem>>) attributes {dimension_semantics = [#tpu.dimension_semantics<parallel>, #tpu.dimension_semantics<arbitrary>], iteration_bounds = array<i64: 2, 4>, scalar_prefetch = 0 : i64, scratch_operands = 1 : i64, tpu.core_type = #tpu.core_type<tc>, window_params = [{transform_indices = @transform_0, window_bounds = array<i64: 1, 16, 72>}, {transform_indices = @transform_1, window_bounds = array<i64: 1, 16, 8>}, {transform_indices = @transform_2, window_bounds = array<i64: 1, 16, 8>}, {pipeline_mode = #tpu.pipeline_mode<synchronous>, transform_indices = @transform_3, window_bounds = array<i64: 72, 8>}, {pipeline_mode = #tpu.pipeline_mode<synchronous>, transform_indices = @transform_4, window_bounds = array<i64: 8, 8>}, {pipeline_mode = #tpu.pipeline_mode<synchronous>, transform_indices = @transform_5, window_bounds = array<i64: 1, 8>}, {pipeline_mode = #tpu.pipeline_mode<synchronous>, transform_indices = @transform_6, window_bounds = array<i64: 1, 8>}, {pipeline_mode = #tpu.pipeline_mode<synchronous>, transform_indices = @transform_7, window_bounds = array<i64: 8, 4>}, {pipeline_mode = #tpu.pipeline_mode<synchronous>, transform_indices = @transform_8, window_bounds = array<i64: 4, 8>}, {transform_indices = @transform_9, window_bounds = array<i64: 1, 16, 8>}, {transform_indices = @transform_10, window_bounds = array<i64: 1, 1, 8>}]} {
    %c0 = arith.constant 0 : index
    %c0_0 = arith.constant 0 : index
    %c0_1 = arith.constant 0 : index
    %0 = vector.load %arg3[%c0, %c0_0, %c0_1] : memref<1x16x8xf32, #tpu.memory_space<vmem>>, vector<1x16x8xf32>
    %1 = vector.shape_cast %0 : vector<1x16x8xf32> to vector<16x8xf32>
    %c0_2 = arith.constant 0 : index
    %c0_3 = arith.constant 0 : index
    %2 = vector.load %arg6[%c0_2, %c0_3] : memref<8x8xf32, #tpu.memory_space<vmem>>, vector<8x8xf32>
    %cst = arith.constant dense<0.000000e+00> : vector<16x8xf32>
    %3 = tpu.matmul %1, %2, %cst {dimension_numbers = #tpu.dot_dimension_numbers<[1], [0], [0], [1], [0, 0, 1, 1], [], []>} : vector<16x8xf32>, vector<8x8xf32>, vector<16x8xf32> -> vector<16x8xf32>
    %c0_4 = arith.constant 0 : index
    %c0_5 = arith.constant 0 : index
    %4 = vector.load %arg7[%c0_4, %c0_5] : memref<1x8xf32, #tpu.memory_space<vmem>>, vector<1x8xf32>
    %5 = vector.broadcast %4 : vector<1x8xf32> to vector<16x8xf32>
    %6 = arith.mulf %3, %5 : vector<16x8xf32>
    %c0_6 = arith.constant 0 : index
    %c0_7 = arith.constant 0 : index
    %7 = vector.load %arg8[%c0_6, %c0_7] : memref<1x8xf32, #tpu.memory_space<vmem>>, vector<1x8xf32>
    %8 = vector.broadcast %7 : vector<1x8xf32> to vector<16x8xf32>
    %9 = arith.addf %6, %8 : vector<16x8xf32>
    %cst_8 = arith.constant 0.000000e+00 : f32
    %10 = vector.broadcast %cst_8 : f32 to vector<16x8xf32>
    %11 = arith.maximumf %9, %10 : vector<16x8xf32>
    %c0_9 = arith.constant 0 : index
    %c0_10 = arith.constant 0 : index
    %c0_11 = arith.constant 0 : index
    %12 = vector.load %arg2[%c0_9, %c0_10, %c0_11] : memref<1x16x72xf32, #tpu.memory_space<vmem>>, vector<1x16x72xf32>
    %13 = vector.shape_cast %12 : vector<1x16x72xf32> to vector<16x72xf32>
    %c0_12 = arith.constant 0 : index
    %c0_13 = arith.constant 0 : index
    %14 = vector.load %arg5[%c0_12, %c0_13] : memref<72x8xf32, #tpu.memory_space<vmem>>, vector<72x8xf32>
    %cst_14 = arith.constant dense<0.000000e+00> : vector<16x8xf32>
    %15 = tpu.matmul %13, %14, %cst_14 {dimension_numbers = #tpu.dot_dimension_numbers<[1], [0], [0], [1], [0, 0, 1, 1], [], []>} : vector<16x72xf32>, vector<72x8xf32>, vector<16x8xf32> -> vector<16x8xf32>
    %c0_15 = arith.constant 0 : index
    %c0_16 = arith.constant 0 : index
    %c0_17 = arith.constant 0 : index
    %16 = vector.load %arg4[%c0_15, %c0_16, %c0_17] : memref<1x16x8xf32, #tpu.memory_space<vmem>>, vector<1x16x8xf32>
    %17 = vector.shape_cast %16 : vector<1x16x8xf32> to vector<16x8xf32>
    %18 = arith.addf %15, %17 : vector<16x8xf32>
    %19 = arith.addf %18, %11 : vector<16x8xf32>
    %c0_18 = arith.constant 0 : index
    %c0_19 = arith.constant 0 : index
    %c0_20 = arith.constant 0 : index
    %20 = vector.load %arg11[%c0_18, %c0_19, %c0_20] : memref<1x16x8xf32, #tpu.memory_space<vmem>>, vector<1x16x8xf32>
    %21 = vector.shape_cast %20 : vector<1x16x8xf32> to vector<16x8xf32>
    %22 = vector.shape_cast %19 : vector<16x8xf32> to vector<1x16x8xf32>
    tpu.vector_store %arg11[%c0_18, %c0_19, %c0_20], %22 {strides = array<i32>} : memref<1x16x8xf32, #tpu.memory_space<vmem>>, vector<1x16x8xf32>,
    %c0_i32 = arith.constant 0 : i32
    %23 = arith.cmpi eq, %arg1, %c0_i32 : i32
    %24 = arith.extui %23 : i1 to i32
    %c0_i32_21 = arith.constant 0 : i32
    %25 = arith.cmpi ne, %24, %c0_i32_21 : i32
    scf.if %25 {
      %cst_28 = arith.constant 0.000000e+00 : f32
      %34 = vector.broadcast %cst_28 : f32 to vector<1x8xf32>
      %c0_29 = arith.constant 0 : index
      %c0_30 = arith.constant 0 : index
      %35 = vector.load %arg13[%c0_29, %c0_30] : memref<1x8xf32, #tpu.memory_space<vmem>>, vector<1x8xf32>
      tpu.vector_store %arg13[%c0_29, %c0_30], %34 {strides = array<i32>} : memref<1x8xf32, #tpu.memory_space<vmem>>, vector<1x8xf32>,
    } else {
    }
    %c0_22 = arith.constant 0 : index
    %c0_23 = arith.constant 0 : index
    %26 = vector.load %arg13[%c0_22, %c0_23] : memref<1x8xf32, #tpu.memory_space<vmem>>, vector<1x8xf32>
    %cst_24 = arith.constant dense<0.000000e+00> : vector<8xf32>
    %27 = vector.multi_reduction <add>, %19, %cst_24 [0] : vector<16x8xf32> to vector<8xf32>
    %28 = vector.shape_cast %27 : vector<8xf32> to vector<1x8xf32>
    %29 = arith.addf %26, %28 : vector<1x8xf32>
    %c0_25 = arith.constant 0 : index
    %c0_26 = arith.constant 0 : index
    %30 = vector.load %arg13[%c0_25, %c0_26] : memref<1x8xf32, #tpu.memory_space<vmem>>, vector<1x8xf32>
    tpu.vector_store %arg13[%c0_25, %c0_26], %29 {strides = array<i32>} : memref<1x8xf32, #tpu.memory_space<vmem>>, vector<1x8xf32>,
    %c3_i32 = arith.constant 3 : i32
    %31 = arith.cmpi eq, %arg1, %c3_i32 : i32
    %32 = arith.extui %31 : i1 to i32
    %c0_i32_27 = arith.constant 0 : i32
    %33 = arith.cmpi ne, %32, %c0_i32_27 : i32
    scf.if %33 {
      %c0_28 = arith.constant 0 : index
      %c0_29 = arith.constant 0 : index
      %34 = vector.load %arg13[%c0_28, %c0_29] : memref<1x8xf32, #tpu.memory_space<vmem>>, vector<1x8xf32>
      %c0_30 = arith.constant 0 : index
      %c0_31 = arith.constant 0 : index
      %35 = vector.load %arg9[%c0_30, %c0_31] : memref<8x4xf32, #tpu.memory_space<vmem>>, vector<8x4xf32>
      %cst_32 = arith.constant dense<0.000000e+00> : vector<1x4xf32>
      %36 = tpu.matmul %34, %35, %cst_32 {dimension_numbers = #tpu.dot_dimension_numbers<[1], [0], [0], [1], [0, 0, 1, 1], [], []>} : vector<1x8xf32>, vector<8x4xf32>, vector<1x4xf32> -> vector<1x4xf32>
      %cst_33 = arith.constant 0.000000e+00 : f32
      %37 = vector.broadcast %cst_33 : f32 to vector<1x4xf32>
      %38 = arith.maximumf %36, %37 : vector<1x4xf32>
      %c0_34 = arith.constant 0 : index
      %c0_35 = arith.constant 0 : index
      %39 = vector.load %arg10[%c0_34, %c0_35] : memref<4x8xf32, #tpu.memory_space<vmem>>, vector<4x8xf32>
      %cst_36 = arith.constant dense<0.000000e+00> : vector<1x8xf32>
      %40 = tpu.matmul %38, %39, %cst_36 {dimension_numbers = #tpu.dot_dimension_numbers<[1], [0], [0], [1], [0, 0, 1, 1], [], []>} : vector<1x4xf32>, vector<4x8xf32>, vector<1x8xf32> -> vector<1x8xf32>
      %cst_37 = arith.constant 0.000000e+00 : f32
      %41 = vector.broadcast %cst_37 : f32 to vector<1x8xf32>
      %42 = arith.subf %41, %40 : vector<1x8xf32>
      %43 = math.exp %42 : vector<1x8xf32>
      %cst_38 = arith.constant 1.000000e+00 : f32
      %44 = vector.broadcast %cst_38 : f32 to vector<1x8xf32>
      %45 = arith.addf %44, %43 : vector<1x8xf32>
      %46 = tpu.reciprocal %45 : vector<1x8xf32> -> vector<1x8xf32>
      %c0_39 = arith.constant 0 : index
      %c0_40 = arith.constant 0 : index
      %c0_41 = arith.constant 0 : index
      %47 = vector.load %arg12[%c0_39, %c0_40, %c0_41] : memref<1x1x8xf32, #tpu.memory_space<vmem>>, vector<1x1x8xf32>
      %48 = vector.shape_cast %47 : vector<1x1x8xf32> to vector<1x8xf32>
      %49 = vector.shape_cast %46 : vector<1x8xf32> to vector<1x1x8xf32>
      tpu.vector_store %arg12[%c0_39, %c0_40, %c0_41], %49 {strides = array<i32>} : memref<1x1x8xf32, #tpu.memory_space<vmem>>, vector<1x1x8xf32>,
    } else {
    }
    return
  }
  func.func @transform_0(%arg0: i32, %arg1: i32) -> (i32, i32, i32) {
    %c0_i32 = arith.constant 0 : i32
    %c0_i32_0 = arith.constant 0 : i32
    return %arg0, %arg1, %c0_i32 : i32, i32, i32
  }
  func.func @transform_1(%arg0: i32, %arg1: i32) -> (i32, i32, i32) {
    %c0_i32 = arith.constant 0 : i32
    %c0_i32_0 = arith.constant 0 : i32
    return %arg0, %arg1, %c0_i32 : i32, i32, i32
  }
  func.func @transform_2(%arg0: i32, %arg1: i32) -> (i32, i32, i32) {
    %c0_i32 = arith.constant 0 : i32
    %c0_i32_0 = arith.constant 0 : i32
    return %arg0, %arg1, %c0_i32 : i32, i32, i32
  }
  func.func @transform_3(%arg0: i32, %arg1: i32) -> (i32, i32) {
    %c0_i32 = arith.constant 0 : i32
    %c0_i32_0 = arith.constant 0 : i32
    %c0_i32_1 = arith.constant 0 : i32
    return %c0_i32, %c0_i32_0 : i32, i32
  }
  func.func @transform_4(%arg0: i32, %arg1: i32) -> (i32, i32) {
    %c0_i32 = arith.constant 0 : i32
    %c0_i32_0 = arith.constant 0 : i32
    %c0_i32_1 = arith.constant 0 : i32
    return %c0_i32, %c0_i32_0 : i32, i32
  }
  func.func @transform_5(%arg0: i32, %arg1: i32) -> (i32, i32) {
    %c0_i32 = arith.constant 0 : i32
    %c0_i32_0 = arith.constant 0 : i32
    %c0_i32_1 = arith.constant 0 : i32
    return %c0_i32, %c0_i32_0 : i32, i32
  }
  func.func @transform_6(%arg0: i32, %arg1: i32) -> (i32, i32) {
    %c0_i32 = arith.constant 0 : i32
    %c0_i32_0 = arith.constant 0 : i32
    %c0_i32_1 = arith.constant 0 : i32
    return %c0_i32, %c0_i32_0 : i32, i32
  }
  func.func @transform_7(%arg0: i32, %arg1: i32) -> (i32, i32) {
    %c0_i32 = arith.constant 0 : i32
    %c0_i32_0 = arith.constant 0 : i32
    %c0_i32_1 = arith.constant 0 : i32
    return %c0_i32, %c0_i32_0 : i32, i32
  }
  func.func @transform_8(%arg0: i32, %arg1: i32) -> (i32, i32) {
    %c0_i32 = arith.constant 0 : i32
    %c0_i32_0 = arith.constant 0 : i32
    %c0_i32_1 = arith.constant 0 : i32
    return %c0_i32, %c0_i32_0 : i32, i32
  }
  func.func @transform_9(%arg0: i32, %arg1: i32) -> (i32, i32, i32) {
    %c0_i32 = arith.constant 0 : i32
    %c0_i32_0 = arith.constant 0 : i32
    return %arg0, %arg1, %c0_i32 : i32, i32, i32
  }
  func.func @transform_10(%arg0: i32, %arg1: i32) -> (i32, i32, i32) {
    %c0_i32 = arith.constant 0 : i32
    %c0_i32_0 = arith.constant 0 : i32
    %c0_i32_1 = arith.constant 0 : i32
    return %arg0, %c0_i32, %c0_i32_0 : i32, i32, i32
  }
}

</mosaic_0001>

<llo_original>
// kernel: tpu_custom_call.1
$region0: #{tpu_custom_call.1}
  #allocation0 [shape = 'u32[]', space=smem, size = 0x4, offset = 0x4, fixed_abs, tag = 'smem constant byte address 0x4 - core index']
  #allocation1 [shape = 'u32[72,128]{1,0:T(1,128)}', space=vmem, size = 0x9000, scoped, tag = 'internal scratch']
  #allocation2 [shape = 'f32[1,8]{1,0:T(1,128)}', space=vmem, size = 0x200, scoped, tag = 'scratch operand']
  %s0 = inlined_call_operand.vmem [shape: f32[2,64,72], index: 0, kind: input, shape index: {}]
  %s1 = inlined_call_operand.vmem [shape: f32[2,64,8], index: 1, kind: input, shape index: {}]
  %s2 = inlined_call_operand.vmem [shape: f32[2,64,8], index: 2, kind: input, shape index: {}]
  %s3 = inlined_call_operand.vmem [shape: f32[72,8], index: 3, kind: input, shape index: {}]
  %s4 = inlined_call_operand.vmem [shape: f32[8,8], index: 4, kind: input, shape index: {}]
  %s5 = inlined_call_operand.vmem [shape: f32[1,8], index: 5, kind: input, shape index: {}]
  %s6 = inlined_call_operand.vmem [shape: f32[1,8], index: 6, kind: input, shape index: {}]
  %s7 = inlined_call_operand.vmem [shape: f32[8,4], index: 7, kind: input, shape index: {}]
  %s8 = inlined_call_operand.vmem [shape: f32[4,8], index: 8, kind: input, shape index: {}]
  %s9 = inlined_call_operand.vmem [shape: f32[2,64,8], index: 9, kind: output, shape index: {0}]
  %s10 = inlined_call_operand.hbm [shape: f32[2,1,8], index: 10, kind: output, shape index: {1}]
  %11 = xla_tuple %s9, %s10
  %s12 = sld [smem:[#allocation0]]
  $region85: #{tpu_custom_call.1} parent=0
    _
  %s14 = ssub.s32 1, %s12
  %s15 = scalar_select 0, %s14, %s12
  $region1: #{tpu_custom_call.1} parent=0
    #allocation3 [shape = 'u8[1024]{0}', space=vmem, size = 0x400, scoped, tag = 'output window, operand 1']
    #allocation4 [shape = 's32[2]{0}', space=sflag, size = 0x8, scoped, tag = 'scoped memory for tpu_custom_call.1']
    %16 = vsyncpa [#allocation4], 0
    %s17 = scalar_lea.sflag [#allocation4], 1
    %18 = vsyncpa %s17, 0
    loop: start=0, step=1, limit=10
    $region2: #{tpu_custom_call.1} parent=1 // loop_pre_header
      _
    $region3: #{tpu_custom_call.1} parent=1 // loop_header
      %s20 = sphi 0, %s24
      %p21 = scmp.ge.s32.totalorder %s20, 10
      %s27 = sphi 0, %s39
      %s28 = sphi 0, %s35
      %s29 = sphi 0, %s27
      %s30 = sphi 0, %s28
      %s31 = sphi 0, %s29
      %s32 = sphi 0, %s30
      %s44 = sphi 0, %s46
      %s47 = sphi 0, %s44
      %s48 = sphi 0, %s47
      %s64 = sphi 0, %s48
      %s72 = sphi 0, %s74
      %s75 = sphi 0, %s72
      %s76 = sphi 0, %s75
      %s92 = sphi 0, %s76
      %s100 = sphi 0, %s102
      %s103 = sphi 0, %s100
      %s104 = sphi 0, %s103
      %s120 = sphi 0, %s104
      %s124 = sphi 0, %s124
      %s126 = sphi 0, %s124
      %s127 = sphi 0, %s126
      %s141 = sphi 0, %s127
      %s145 = sphi 0, %s145
      %s147 = sphi 0, %s145
      %s148 = sphi 0, %s147
      %s162 = sphi 0, %s148
      %s166 = sphi 0, %s166
      %s168 = sphi 0, %s166
      %s169 = sphi 0, %s168
      %s183 = sphi 0, %s169
      %s187 = sphi 0, %s187
      %s189 = sphi 0, %s187
      %s190 = sphi 0, %s189
      %s204 = sphi 0, %s190
      %s208 = sphi 0, %s208
      %s210 = sphi 0, %s208
      %s211 = sphi 0, %s210
      %s225 = sphi 0, %s211
      %s229 = sphi 0, %s229
      %s231 = sphi 0, %s229
      %s232 = sphi 0, %s231
      %s246 = sphi 0, %s232
      %s254 = sphi 0, %s256
      %s257 = sphi 0, %s254
      %s258 = sphi 0, %s257
      %s274 = sphi 0, %s258
      %s280 = sphi 0, %s282
      %s283 = sphi 0, %s280
      %s284 = sphi 0, %s283
      %s300 = sphi 0, %s284
    $region4: #{tpu_custom_call.1} parent=1 // loop_header_branch
      %23 = sbr.rel (%p21) target = $region8
    $region5: #{tpu_custom_call.1} parent=1 // loop_body
      %s25 = ssub.s32 %s20, 1
      %s26 = ssub.s32 %s20, 2
      %s33 = sadd.s32 1, %s28
      %p34 = scmp.ge.s32.totalorder %s33, 4
      %s35 = scalar_select %p34, 0, %s33
      %s36 = sadd.s32 1, %s27
      %s37 = scalar_select %p34, %s36, %s27
      %p38 = scmp.ge.s32.totalorder %s37, 2
      %s39 = scalar_select %p38, 0, %s37
      %s40 = ssub.s32 %s27, %s39
      %s41 = ssub.s32 %s28, %s35
      %s42 = sor.u32 %s40, %s41
      %p43 = scmp.eq.s32.totalorder %s42, 0
      %s45 = sadd.s32 %s44, 1
      %s46 = scalar_select %p43, %s44, %s45
      %p49 = pneg %p43
      %p50 = scmp.eq.s32.totalorder %s20, 7
      %p51 = por %p49, %p50
      %p52 = scmp.ne.s32.totalorder %s44, %s47
      %p53 = scmp.eq.s32.totalorder %s20, 0
      %p54 = por %p52, %p53
      %p55 = scmp.ne.s32.totalorder %s44, %s47
      %p56 = scmp.eq.s32.totalorder %s25, 7
      %p57 = por %p55, %p56
      %p58 = scmp.ne.s32.totalorder %s47, %s48
      %p59 = scmp.eq.s32.totalorder %s25, 0
      %p60 = por %p58, %p59
      %p61 = scmp.ne.s32.totalorder %s47, %s48
      %p62 = scmp.eq.s32.totalorder %s26, 7
      %p63 = por %p61, %p62
      %p65 = scmp.ne.s32.totalorder %s48, %s64
      %p66 = scmp.eq.s32.totalorder %s26, 0
      %p67 = por %p65, %p66
      %s68 = ssub.s32 %s27, %s39
      %s69 = ssub.s32 %s28, %s35
      %s70 = sor.u32 %s68, %s69
      %p71 = scmp.eq.s32.totalorder %s70, 0
      %s73 = sadd.s32 %s72, 1
      %s74 = scalar_select %p71, %s72, %s73
      %p77 = pneg %p71
      %p78 = scmp.eq.s32.totalorder %s20, 7
      %p79 = por %p77, %p78
      %p80 = scmp.ne.s32.totalorder %s72, %s75
      %p81 = scmp.eq.s32.totalorder %s20, 0
      %p82 = por %p80, %p81
      %p83 = scmp.ne.s32.totalorder %s72, %s75
      %p84 = scmp.eq.s32.totalorder %s25, 7
      %p85 = por %p83, %p84
      %p86 = scmp.ne.s32.totalorder %s75, %s76
      %p87 = scmp.eq.s32.totalorder %s25, 0
      %p88 = por %p86, %p87
      %p89 = scmp.ne.s32.totalorder %s75, %s76
      %p90 = scmp.eq.s32.totalorder %s26, 7
      %p91 = por %p89, %p90
      %p93 = scmp.ne.s32.totalorder %s76, %s92
      %p94 = scmp.eq.s32.totalorder %s26, 0
      %p95 = por %p93, %p94
      %s96 = ssub.s32 %s27, %s39
      %s97 = ssub.s32 %s28, %s35
      %s98 = sor.u32 %s96, %s97
      %p99 = scmp.eq.s32.totalorder %s98, 0
      %s101 = sadd.s32 %s100, 1
      %s102 = scalar_select %p99, %s100, %s101
      %p105 = pneg %p99
      %p106 = scmp.eq.s32.totalorder %s20, 7
      %p107 = por %p105, %p106
      %p108 = scmp.ne.s32.totalorder %s100, %s103
      %p109 = scmp.eq.s32.totalorder %s20, 0
      %p110 = por %p108, %p109
      %p111 = scmp.ne.s32.totalorder %s100, %s103
      %p112 = scmp.eq.s32.totalorder %s25, 7
      %p113 = por %p111, %p112
      %p114 = scmp.ne.s32.totalorder %s103, %s104
      %p115 = scmp.eq.s32.totalorder %s25, 0
      %p116 = por %p114, %p115
      %p117 = scmp.ne.s32.totalorder %s103, %s104
      %p118 = scmp.eq.s32.totalorder %s26, 7
      %p119 = por %p117, %p118
      %p121 = scmp.ne.s32.totalorder %s104, %s120
      %p122 = scmp.eq.s32.totalorder %s26, 0
      %p123 = por %p121, %p122
      %s125 = sadd.s32 %s124, 1
      %p128 = scmp.eq.s32.totalorder %s20, 7
      %p129 = scmp.ne.s32.totalorder %s124, %s126
      %p130 = scmp.eq.s32.totalorder %s20, 0
      %p131 = por %p129, %p130
      %p132 = scmp.ne.s32.totalorder %s124, %s126
      %p133 = scmp.eq.s32.totalorder %s25, 7
      %p134 = por %p132, %p133
      %p135 = scmp.ne.s32.totalorder %s126, %s127
      %p136 = scmp.eq.s32.totalorder %s25, 0
      %p137 = por %p135, %p136
      %p138 = scmp.ne.s32.totalorder %s126, %s127
      %p139 = scmp.eq.s32.totalorder %s26, 7
      %p140 = por %p138, %p139
      %p142 = scmp.ne.s32.totalorder %s127, %s141
      %p143 = scmp.eq.s32.totalorder %s26, 0
      %p144 = por %p142, %p143
      %s146 = sadd.s32 %s145, 1
      %p149 = scmp.eq.s32.totalorder %s20, 7
      %p150 = scmp.ne.s32.totalorder %s145, %s147
      %p151 = scmp.eq.s32.totalorder %s20, 0
      %p152 = por %p150, %p151
      %p153 = scmp.ne.s32.totalorder %s145, %s147
      %p154 = scmp.eq.s32.totalorder %s25, 7
      %p155 = por %p153, %p154
      %p156 = scmp.ne.s32.totalorder %s147, %s148
      %p157 = scmp.eq.s32.totalorder %s25, 0
      %p158 = por %p156, %p157
      %p159 = scmp.ne.s32.totalorder %s147, %s148
      %p160 = scmp.eq.s32.totalorder %s26, 7
      %p161 = por %p159, %p160
      %p163 = scmp.ne.s32.totalorder %s148, %s162
      %p164 = scmp.eq.s32.totalorder %s26, 0
      %p165 = por %p163, %p164
      %s167 = sadd.s32 %s166, 1
      %p170 = scmp.eq.s32.totalorder %s20, 7
      %p171 = scmp.ne.s32.totalorder %s166, %s168
      %p172 = scmp.eq.s32.totalorder %s20, 0
      %p173 = por %p171, %p172
      %p174 = scmp.ne.s32.totalorder %s166, %s168
      %p175 = scmp.eq.s32.totalorder %s25, 7
      %p176 = por %p174, %p175
      %p177 = scmp.ne.s32.totalorder %s168, %s169
      %p178 = scmp.eq.s32.totalorder %s25, 0
      %p179 = por %p177, %p178
      %p180 = scmp.ne.s32.totalorder %s168, %s169
      %p181 = scmp.eq.s32.totalorder %s26, 7
      %p182 = por %p180, %p181
      %p184 = scmp.ne.s32.totalorder %s169, %s183
      %p185 = scmp.eq.s32.totalorder %s26, 0
      %p186 = por %p184, %p185
      %s188 = sadd.s32 %s187, 1
      %p191 = scmp.eq.s32.totalorder %s20, 7
      %p192 = scmp.ne.s32.totalorder %s187, %s189
      %p193 = scmp.eq.s32.totalorder %s20, 0
      %p194 = por %p192, %p193
      %p195 = scmp.ne.s32.totalorder %s187, %s189
      %p196 = scmp.eq.s32.totalorder %s25, 7
      %p197 = por %p195, %p196
      %p198 = scmp.ne.s32.totalorder %s189, %s190
      %p199 = scmp.eq.s32.totalorder %s25, 0
      %p200 = por %p198, %p199
      %p201 = scmp.ne.s32.totalorder %s189, %s190
      %p202 = scmp.eq.s32.totalorder %s26, 7
      %p203 = por %p201, %p202
      %p205 = scmp.ne.s32.totalorder %s190, %s204
      %p206 = scmp.eq.s32.totalorder %s26, 0
      %p207 = por %p205, %p206
      %s209 = sadd.s32 %s208, 1
      %p212 = scmp.eq.s32.totalorder %s20, 7
      %p213 = scmp.ne.s32.totalorder %s208, %s210
      %p214 = scmp.eq.s32.totalorder %s20, 0
      %p215 = por %p213, %p214
      %p216 = scmp.ne.s32.totalorder %s208, %s210
      %p217 = scmp.eq.s32.totalorder %s25, 7
      %p218 = por %p216, %p217
      %p219 = scmp.ne.s32.totalorder %s210, %s211
      %p220 = scmp.eq.s32.totalorder %s25, 0
      %p221 = por %p219, %p220
      %p222 = scmp.ne.s32.totalorder %s210, %s211
      %p223 = scmp.eq.s32.totalorder %s26, 7
      %p224 = por %p222, %p223
      %p226 = scmp.ne.s32.totalorder %s211, %s225
      %p227 = scmp.eq.s32.totalorder %s26, 0
      %p228 = por %p226, %p227
      %s230 = sadd.s32 %s229, 1
      %p233 = scmp.eq.s32.totalorder %s20, 7
      %p234 = scmp.ne.s32.totalorder %s229, %s231
      %p235 = scmp.eq.s32.totalorder %s20, 0
      %p236 = por %p234, %p235
      %p237 = scmp.ne.s32.totalorder %s229, %s231
      %p238 = scmp.eq.s32.totalorder %s25, 7
      %p239 = por %p237, %p238
      %p240 = scmp.ne.s32.totalorder %s231, %s232
      %p241 = scmp.eq.s32.totalorder %s25, 0
      %p242 = por %p240, %p241
      %p243 = scmp.ne.s32.totalorder %s231, %s232
      %p244 = scmp.eq.s32.totalorder %s26, 7
      %p245 = por %p243, %p244
      %p247 = scmp.ne.s32.totalorder %s232, %s246
      %p248 = scmp.eq.s32.totalorder %s26, 0
      %p249 = por %p247, %p248
      %s250 = ssub.s32 %s27, %s39
      %s251 = ssub.s32 %s28, %s35
      %s252 = sor.u32 %s250, %s251
      %p253 = scmp.eq.s32.totalorder %s252, 0
      %s255 = sadd.s32 %s254, 1
      %s256 = scalar_select %p253, %s254, %s255
      %p259 = pneg %p253
      %p260 = scmp.eq.s32.totalorder %s20, 7
      %p261 = por %p259, %p260
      %p262 = scmp.ne.s32.totalorder %s254, %s257
      %p263 = scmp.eq.s32.totalorder %s20, 0
      %p264 = por %p262, %p263
      %p265 = scmp.ne.s32.totalorder %s254, %s257
      %p266 = scmp.eq.s32.totalorder %s25, 7
      %p267 = por %p265, %p266
      %p268 = scmp.ne.s32.totalorder %s257, %s258
      %p269 = scmp.eq.s32.totalorder %s25, 0
      %p270 = por %p268, %p269
      %p271 = scmp.ne.s32.totalorder %s257, %s258
      %p272 = scmp.eq.s32.totalorder %s26, 7
      %p273 = por %p271, %p272
      %p275 = scmp.ne.s32.totalorder %s258, %s274
      %p276 = scmp.eq.s32.totalorder %s26, 0
      %p277 = por %p275, %p276
      %s278 = ssub.s32 %s27, %s39
      %p279 = scmp.eq.s32.totalorder %s278, 0
      %s281 = sadd.s32 %s280, 1
      %s282 = scalar_select %p279, %s280, %s281
      %p285 = pneg %p279
      %p286 = scmp.eq.s32.totalorder %s20, 7
      %p287 = por %p285, %p286
      %p288 = scmp.ne.s32.totalorder %s280, %s283
      %p289 = scmp.eq.s32.totalorder %s20, 0
      %p290 = por %p288, %p289
      %p291 = scmp.ne.s32.totalorder %s280, %s283
      %p292 = scmp.eq.s32.totalorder %s25, 7
      %p293 = por %p291, %p292
      %p294 = scmp.ne.s32.totalorder %s283, %s284
      %p295 = scmp.eq.s32.totalorder %s25, 0
      %p296 = por %p294, %p295
      %p297 = scmp.ne.s32.totalorder %s283, %s284
      %p298 = scmp.eq.s32.totalorder %s26, 7
      %p299 = por %p297, %p298
      %p301 = scmp.ne.s32.totalorder %s284, %s300
      %p302 = scmp.eq.s32.totalorder %s26, 0
      %p303 = por %p301, %p302
      %p304 = scmp.le.s32.totalorder 1, %s20
      %p305 = scmp.lt.s32.totalorder %s20, 9
      %p306 = pnand %p304, %p305
      %p307 = pneg %p306
      // Predicated region
      $region9: #{tpu_custom_call.1} parent=5 // pred_check
        _
      $region10: #{tpu_custom_call.1} parent=5 // pred_check_branch
        %309 = sbr.rel (%p306) target = $region12
      $region11: #{tpu_custom_call.1} parent=5 // pred_region
        %s310 = ssub.s32 %s20, 1
        // Predicated region
        $region13: #{tpu_custom_call.1} parent=11 // pred_check
          %p311 = pneg %p137
        $region14: #{tpu_custom_call.1} parent=11 // pred_check_branch
          %313 = sbr.rel (%p311) target = $region16
        $region15: #{tpu_custom_call.1} parent=11 // pred_region
          _
        $region16: #{tpu_custom_call.1} parent=11 // pred_fallthru
          _
        // Predicated region
        $region17: #{tpu_custom_call.1} parent=11 // pred_check
          %p314 = pneg %p158
        $region18: #{tpu_custom_call.1} parent=11 // pred_check_branch
          %316 = sbr.rel (%p314) target = $region20
        $region19: #{tpu_custom_call.1} parent=11 // pred_region
          _
        $region20: #{tpu_custom_call.1} parent=11 // pred_fallthru
          _
        // Predicated region
        $region21: #{tpu_custom_call.1} parent=11 // pred_check
          %p317 = pneg %p179
        $region22: #{tpu_custom_call.1} parent=11 // pred_check_branch
          %319 = sbr.rel (%p317) target = $region24
        $region23: #{tpu_custom_call.1} parent=11 // pred_region
          _
        $region24: #{tpu_custom_call.1} parent=11 // pred_fallthru
          _
        // Predicated region
        $region25: #{tpu_custom_call.1} parent=11 // pred_check
          %p320 = pneg %p200
        $region26: #{tpu_custom_call.1} parent=11 // pred_check_branch
          %322 = sbr.rel (%p320) target = $region28
        $region27: #{tpu_custom_call.1} parent=11 // pred_region
          _
        $region28: #{tpu_custom_call.1} parent=11 // pred_fallthru
          _
        // Predicated region
        $region29: #{tpu_custom_call.1} parent=11 // pred_check
          %p323 = pneg %p221
        $region30: #{tpu_custom_call.1} parent=11 // pred_check_branch
          %325 = sbr.rel (%p323) target = $region32
        $region31: #{tpu_custom_call.1} parent=11 // pred_region
          _
        $region32: #{tpu_custom_call.1} parent=11 // pred_fallthru
          _
        // Predicated region
        $region33: #{tpu_custom_call.1} parent=11 // pred_check
          %p326 = pneg %p242
        $region34: #{tpu_custom_call.1} parent=11 // pred_check_branch
          %328 = sbr.rel (%p326) target = $region36
        $region35: #{tpu_custom_call.1} parent=11 // pred_region
          _
        $region36: #{tpu_custom_call.1} parent=11 // pred_fallthru
          _
      $region12: #{tpu_custom_call.1} parent=5 // pred_fallthru
        _
      %p329 = scmp.lt.s32.totalorder %s20, 8
      // Predicated region
      $region37: #{tpu_custom_call.1} parent=5 // pred_check
        %p330 = pneg %p329
      $region38: #{tpu_custom_call.1} parent=5 // pred_check_branch
        %332 = sbr.rel (%p330) target = $region40
      $region39: #{tpu_custom_call.1} parent=5 // pred_region
        // Predicated region
        $region41: #{tpu_custom_call.1} parent=39 // pred_check
          %p333 = pneg %p54
        $region42: #{tpu_custom_call.1} parent=39 // pred_check_branch
          %335 = sbr.rel (%p333) target = $region44
        $region43: #{tpu_custom_call.1} parent=39 // pred_region
          %s336 = smul.u32 2, %s28
          %p337 = scmp.lt.s32.totalorder %s27, 1
          %s338 = scalar_select %p337, %s27, 1
          %p339 = scmp.lt.s32.totalorder %s336, 7
          %s340 = scalar_select %p339, %s336, 7
          %s341 = smul.addr %s338, 8
          %s342 = sadd.s32 %s340, %s341
          %s343 = smul.addr %s342, 8
          %s344 = scalar_lea.vmem %s0, %s343
          %s345 = smul.u32 2, %s28
        $region44: #{tpu_custom_call.1} parent=39 // pred_fallthru
          _
        // Predicated region
        $region45: #{tpu_custom_call.1} parent=39 // pred_check
          %p346 = pneg %p82
        $region46: #{tpu_custom_call.1} parent=39 // pred_check_branch
          %348 = sbr.rel (%p346) target = $region48
        $region47: #{tpu_custom_call.1} parent=39 // pred_region
          %s349 = smul.u32 2, %s28
          %p350 = scmp.lt.s32.totalorder %s27, 1
          %s351 = scalar_select %p350, %s27, 1
          %p352 = scmp.lt.s32.totalorder %s349, 7
          %s353 = scalar_select %p352, %s349, 7
          %s354 = smul.addr %s351, 8
          %s355 = sadd.s32 %s353, %s354
          %s356 = smul.addr %s355, 8
          %s357 = scalar_lea.vmem %s1, %s356
          %s358 = smul.u32 2, %s28
        $region48: #{tpu_custom_call.1} parent=39 // pred_fallthru
          _
        // Predicated region
        $region49: #{tpu_custom_call.1} parent=39 // pred_check
          %p359 = pneg %p110
        $region50: #{tpu_custom_call.1} parent=39 // pred_check_branch
          %361 = sbr.rel (%p359) target = $region52
        $region51: #{tpu_custom_call.1} parent=39 // pred_region
          %s362 = smul.u32 2, %s28
          %p363 = scmp.lt.s32.totalorder %s27, 1
          %s364 = scalar_select %p363, %s27, 1
          %p365 = scmp.lt.s32.totalorder %s362, 7
          %s366 = scalar_select %p365, %s362, 7
          %s367 = smul.addr %s364, 8
          %s368 = sadd.s32 %s366, %s367
          %s369 = smul.addr %s368, 8
          %s370 = scalar_lea.vmem %s2, %s369
          %s371 = smul.u32 2, %s28
        $region52: #{tpu_custom_call.1} parent=39 // pred_fallthru
          _
      $region40: #{tpu_custom_call.1} parent=5 // pred_fallthru
        _
      %p372 = scmp.le.s32.totalorder 1, %s20
      %p373 = scmp.lt.s32.totalorder %s20, 9
      %p374 = pnand %p372, %p373
      %p375 = pneg %p374
      // Predicated region
      $region53: #{tpu_custom_call.1} parent=5 // pred_check
        _
      $region54: #{tpu_custom_call.1} parent=5 // pred_check_branch
        %377 = sbr.rel (%p374) target = $region56
      $region55: #{tpu_custom_call.1} parent=5 // pred_region
        %s378 = ssub.s32 %s20, 1
        %s379 = smul.u32 2, %s30
        %p380 = scmp.lt.s32.totalorder %s29, 1
        %s381 = scalar_select %p380, %s29, 1
        %p382 = scmp.lt.s32.totalorder %s379, 7
        %s383 = scalar_select %p382, %s379, 7
        %s384 = smul.addr %s381, 8
        %s385 = sadd.s32 %s383, %s384
        %s386 = smul.addr %s385, 8
        %s387 = scalar_lea.vmem %s0, %s386
        %p388 = pneg %p60
        %p389 = pneg %p57
        %s390 = smul.u32 2, %s30
        %p391 = scmp.lt.s32.totalorder %s29, 1
        %s392 = scalar_select %p391, %s29, 1
        %p393 = scmp.lt.s32.totalorder %s390, 7
        %s394 = scalar_select %p393, %s390, 7
        %s395 = smul.addr %s392, 8
        %s396 = sadd.s32 %s394, %s395
        %s397 = smul.addr %s396, 8
        %s398 = scalar_lea.vmem %s1, %s397
        %p399 = pneg %p88
        %p400 = pneg %p85
        %s401 = smul.u32 2, %s30
        %p402 = scmp.lt.s32.totalorder %s29, 1
        %s403 = scalar_select %p402, %s29, 1
        %p404 = scmp.lt.s32.totalorder %s401, 7
        %s405 = scalar_select %p404, %s401, 7
        %s406 = smul.addr %s403, 8
        %s407 = sadd.s32 %s405, %s406
        %s408 = smul.addr %s407, 8
        %s409 = scalar_lea.vmem %s2, %s408
        %p410 = pneg %p116
        %p411 = pneg %p113
        %p412 = pneg %p137
        %p413 = pneg %p134
        %p414 = pneg %p158
        %p415 = pneg %p155
        %p416 = pneg %p179
        %p417 = pneg %p176
        %p418 = pneg %p200
        %p419 = pneg %p197
        %p420 = pneg %p221
        %p421 = pneg %p218
        %p422 = pneg %p242
        %p423 = pneg %p239
        %p424 = pneg %p270
        %p425 = pneg %p267
        %s426 = smul.u32 2, %s30
        %p427 = scmp.lt.s32.totalorder %s29, 1
        %s428 = scalar_select %p427, %s29, 1
        %p429 = scmp.lt.s32.totalorder %s426, 7
        %s430 = scalar_select %p429, %s426, 7
        %s431 = smul.addr %s428, 8
        %s432 = sadd.s32 %s430, %s431
        %s433 = smul.addr %s432, 8
        %s434 = scalar_lea.vmem %s9, %s433
        %p435 = pneg %p296
        %p436 = pneg %p293
        %s437 = sand.u32 %s283, 1
        %s438 = scalar_lea.sflag [#allocation4], %s437
        %s439 = sand.u32 %s283, 1
        %s440 = scalar_lea.vmem [#allocation3], %s439
        %s441 = smul.u32 2, %s30
        %p442 = scmp.lt.s32.totalorder %s29, 1
        %s443 = scalar_select %p442, %s29, 1
        %p444 = scmp.lt.s32.totalorder %s441, 7
        %s445 = scalar_select %p444, %s441, 7
        %s446 = smul.addr %s443, 8
        %s447 = sadd.s32 %s445, %s446
        %s448 = smul.addr %s447, 8
        %s449 = scalar_lea.vmem %s0, %s448
        %s450 = smul.u32 2, %s30
        %s451 = smul.u32 2, %s30
        %p452 = scmp.lt.s32.totalorder %s29, 1
        %s453 = scalar_select %p452, %s29, 1
        %p454 = scmp.lt.s32.totalorder %s451, 7
        %s455 = scalar_select %p454, %s451, 7
        %s456 = smul.addr %s453, 8
        %s457 = sadd.s32 %s455, %s456
        %s458 = smul.addr %s457, 8
        %s459 = scalar_lea.vmem %s1, %s458
        %s460 = smul.u32 2, %s30
        %s461 = smul.u32 2, %s30
        %p462 = scmp.lt.s32.totalorder %s29, 1
        %s463 = scalar_select %p462, %s29, 1
        %p464 = scmp.lt.s32.totalorder %s461, 7
        %s465 = scalar_select %p464, %s461, 7
        %s466 = smul.addr %s463, 8
        %s467 = sadd.s32 %s465, %s466
        %s468 = smul.addr %s467, 8
        %s469 = scalar_lea.vmem %s2, %s468
        %s470 = smul.u32 2, %s30
        %s471 = smul.u32 2, %s30
        %p472 = scmp.lt.s32.totalorder %s29, 1
        %s473 = scalar_select %p472, %s29, 1
        %p474 = scmp.lt.s32.totalorder %s471, 7
        %s475 = scalar_select %p474, %s471, 7
        %s476 = smul.addr %s473, 8
        %s477 = sadd.s32 %s475, %s476
        %s478 = smul.addr %s477, 8
        %s479 = scalar_lea.vmem %s9, %s478
        %s480 = smul.u32 2, %s30
        %v481 = vld [vmem:[%s459] sm:$0xff]
        %v482 = vld [vmem:[%s459 + $0x8] sm:$0xff]
        %v483 = vld [vmem:[%s4] sm:$0xff]
        %vm484 = vcmask 64512
        %v486 = vsel %vm484, %v481, 0
        %v489 = vsel %vm484, %v482, 0
        %491 = vmatpush.msra.mxu0 0.0
        %492 = vmatpush.msra.mxu0 0.0
        %493 = vmatpush.msra.mxu0 0.0
        %494 = vmatpush.msra.mxu0 0.0
        %495 = vmatpush.msra.mxu0 0.0
        %496 = vmatpush.msra.mxu0 0.0
        %497 = vmatpush.msra.mxu0 0.0
        %498 = vmatpush.msra.mxu0 0.0
        %499 = vmatpush.msra.mxu0 0.0
        %500 = vmatpush.msra.mxu0 0.0
        %501 = vmatpush.msra.mxu0 0.0
        %502 = vmatpush.msra.mxu0 0.0
        %503 = vmatpush.msra.mxu0 0.0
        %504 = vmatpush.msra.mxu0 0.0
        %505 = vmatpush.msra.mxu0 0.0
        %506 = vmatpush.msra.mxu0 %v483
        %507 = vmatmul.f32.gmra.mxu0 %v486
        %v508 = vpop.f32.mrf.mxu0
        %v509 = vadd.f32 0.0, %v508
        %510 = vmatmul.f32.gmra.mxu0 %v489
        %v511 = vpop.f32.mrf.mxu0
        %v512 = vadd.f32 0.0, %v511
        %513 = vdwg.mxu0
        %v514 = vld [vmem:[%s5] sm:$0x1]
        %v516 = vperm.slane %v514, 0
        %v518 = vmul.f32 %v509, %v516
        %v519 = vmul.f32 %v512, %v516
        %v520 = vld [vmem:[%s6] sm:$0x1]
        %v522 = vperm.slane %v520, 0
        %v524 = vadd.f32 %v518, %v522
        %v525 = vadd.f32 %v519, %v522
        %v526 = vmax.f32 %v524, 0.0
        %v527 = vmax.f32 %v525, 0.0
        %v528 = vld [vmem:[%s449] sm:$0xff]
        %v529 = vld [vmem:[%s449 + $0x8] sm:$0xff]
        %v530 = vld [vmem:[%s3] sm:$0xff]
        %v531 = vld [vmem:[%s3 + $0x8] sm:$0xff]
        %v532 = vld [vmem:[%s3 + $0x10] sm:$0xff]
        %v533 = vld [vmem:[%s3 + $0x18] sm:$0xff]
        %v534 = vld [vmem:[%s3 + $0x20] sm:$0xff]
        %v535 = vld [vmem:[%s3 + $0x28] sm:$0xff]
        %v536 = vld [vmem:[%s3 + $0x30] sm:$0xff]
        %v537 = vld [vmem:[%s3 + $0x38] sm:$0xff]
        %v538 = vld [vmem:[%s3 + $0x40] sm:$0xff]
        %v539 = vld [vmem:[%s469] sm:$0xff]
        %v540 = vld [vmem:[%s469 + $0x8] sm:$0xff]
        %vm541 = vcmask 588800
        %v543 = vsel %vm541, %v528, 0
        %v546 = vsel %vm541, %v529, 0
        %548 = vmatpush.msra.mxu0 0.0
        %549 = vmatpush.msra.mxu0 0.0
        %550 = vmatpush.msra.mxu0 0.0
        %551 = vmatpush.msra.mxu0 0.0
        %552 = vmatpush.msra.mxu0 0.0
        %553 = vmatpush.msra.mxu0 0.0
        %554 = vmatpush.msra.mxu0 0.0
        %555 = vmatpush.msra.mxu0 %v538
        %556 = vmatpush.msra.mxu0 %v537
        %557 = vmatpush.msra.mxu0 %v536
        %558 = vmatpush.msra.mxu0 %v535
        %559 = vmatpush.msra.mxu0 %v534
        %560 = vmatpush.msra.mxu0 %v533
        %561 = vmatpush.msra.mxu0 %v532
        %562 = vmatpush.msra.mxu0 %v531
        %563 = vmatpush.msra.mxu0 %v530
        %564 = vmatmul.f32.gmra.mxu0 %v543
        %v565 = vpop.f32.mrf.mxu0
        %v566 = vadd.f32 %v539, %v565
        %567 = vmatmul.f32.gmra.mxu0 %v546
        %v568 = vpop.f32.mrf.mxu0
        %v569 = vadd.f32 %v540, %v568
        %570 = vdwg.mxu0
        %v571 = vadd.f32 %v566, %v526
        %v572 = vadd.f32 %v569, %v527
        %573 = vst.msk [vmem:[%s479] sm:$0xff] %vm484, %v571
        %574 = vst.msk [vmem:[%s479 + $0x8] sm:$0xff] %vm484, %v572
        %p575 = scmp.eq.s32.totalorder %s30, 0
        // Predicated region
        $region57: #{tpu_custom_call.1} parent=55 // pred_check
          %p576 = pneg %p575
        $region58: #{tpu_custom_call.1} parent=55 // pred_check_branch
          %578 = sbr.rel (%p576) target = $region60
        $region59: #{tpu_custom_call.1} parent=55 // pred_region
          %vm579 = vcmask 57344
          %580 = vst.msk [vmem:[#allocation2] sm:$0x1] %vm579, 0.0
        $region60: #{tpu_custom_call.1} parent=55 // pred_fallthru
          _
        %v581 = vld [vmem:[#allocation2] sm:$0x1]
        %v582 = vsel %vm484, %v571, 0.0
        %v583 = vsel %vm484, %v572, 0.0
        %v584 = vadd.f32 %v582, %v583
        %v585 = vrot.slane %v584, 4
        %v586 = vadd.f32 %v584, %v585
        %v587 = vrot.slane %v586, 2
        %v588 = vadd.f32 %v586, %v587
        %v589 = vrot.slane %v588, 1
        %v590 = vadd.f32 %v588, %v589
        %v591 = vadd.f32 %v581, %v590
        %vm592 = vcmask 57344
        %593 = vst.msk [vmem:[#allocation2] sm:$0x1] %vm592, %v591
        %p594 = scmp.eq.s32.totalorder %s30, 3
        // Predicated region
        $region61: #{tpu_custom_call.1} parent=55 // pred_check
          %p595 = pneg %p594
        $region62: #{tpu_custom_call.1} parent=55 // pred_check_branch
          %597 = sbr.rel (%p595) target = $region64
        $region63: #{tpu_custom_call.1} parent=55 // pred_region
          %v598 = vld [vmem:[#allocation2] sm:$0x1]
          %v599 = vld [vmem:[%s7] sm:$0xff]
          %v601 = vsel %vm484, %v598, 0
          %603 = vmatpush.msra.mxu0 0.0
          %604 = vmatpush.msra.mxu0 0.0
          %605 = vmatpush.msra.mxu0 0.0
          %606 = vmatpush.msra.mxu0 0.0
          %607 = vmatpush.msra.mxu0 0.0
          %608 = vmatpush.msra.mxu0 0.0
          %609 = vmatpush.msra.mxu0 0.0
          %610 = vmatpush.msra.mxu0 0.0
          %611 = vmatpush.msra.mxu0 0.0
          %612 = vmatpush.msra.mxu0 0.0
          %613 = vmatpush.msra.mxu0 0.0
          %614 = vmatpush.msra.mxu0 0.0
          %615 = vmatpush.msra.mxu0 0.0
          %616 = vmatpush.msra.mxu0 0.0
          %617 = vmatpush.msra.mxu0 0.0
          %618 = vmatpush.msra.mxu0 %v599
          %619 = vmatmul.f32.gmra.mxu0 %v601
          %v620 = vpop.f32.mrf.mxu0
          %v621 = vadd.f32 0.0, %v620
          %622 = vdwg.mxu0
          %v623 = vmax.f32 %v621, 0.0
          %v624 = vld [vmem:[%s8] sm:$0xf]
          %vm625 = vcmask 31744
          %v627 = vsel %vm625, %v623, 0
          %vm629 = vcmask 1043456
          %v631 = vsel %vm629, %v624, 0
          %633 = vmatpush.msra.mxu0 0.0
          %634 = vmatpush.msra.mxu0 0.0
          %635 = vmatpush.msra.mxu0 0.0
          %636 = vmatpush.msra.mxu0 0.0
          %637 = vmatpush.msra.mxu0 0.0
          %638 = vmatpush.msra.mxu0 0.0
          %639 = vmatpush.msra.mxu0 0.0
          %640 = vmatpush.msra.mxu0 0.0
          %641 = vmatpush.msra.mxu0 0.0
          %642 = vmatpush.msra.mxu0 0.0
          %643 = vmatpush.msra.mxu0 0.0
          %644 = vmatpush.msra.mxu0 0.0
          %645 = vmatpush.msra.mxu0 0.0
          %646 = vmatpush.msra.mxu0 0.0
          %647 = vmatpush.msra.mxu0 0.0
          %648 = vmatpush.msra.mxu0 %v631
          %649 = vmatmul.f32.gmra.mxu0 %v627
          %v650 = vpop.f32.mrf.mxu0
          %v651 = vadd.f32 0.0, %v650
          %652 = vdwg.mxu0
          %v653 = vsub.f32 0.0, %v651
          %v654 = vmul.f32 %v653, 1.442695
          %v655 = vpow.pop %v654
          %v656 = vadd.f32 %v655, 1.0
          %v657 = vrcp.pop %v656
          %v658 = vmul.f32 %v656, %v657
          %v659 = vsub.f32 1.0, %v658
          %v660 = vmul.f32 %v657, %v659
          %v661 = vadd.f32 %v657, %v660
          %vm662 = vweird.f32 %v656
          %vm663 = vweird.f32 %v657
          %vm664 = vmor %vm662, %vm663
          %v665 = vsel %vm664, %v657, %v661
          %v666 = vand.u32 2147483647, %v656
          %vm667 = vcmp.eq.f32.partialorder %v666, 8.507059e+37
          %v668 = vand.u32 %v656, 2147483648
          %v669 = vor.u32 1.1754944e-38, %v668
          %v670 = vsel %vm667, %v669, %v665
          %671 = vst.msk [vmem:[%s440] sm:$0x1] %vm592, %v670
        $region64: #{tpu_custom_call.1} parent=55 // pred_fallthru
          _
        %s672 = smul.u32 2, %s30
        %p673 = scmp.lt.s32.totalorder %s29, 1
        %s674 = scalar_select %p673, %s29, 1
        %p675 = scmp.lt.s32.totalorder %s672, 7
        %s676 = scalar_select %p675, %s672, 7
        %s677 = smul.addr %s674, 8
        %s678 = sadd.s32 %s676, %s677
        %s679 = smul.addr %s678, 8
        %s680 = scalar_lea.vmem %s9, %s679
        %s681 = sand.u32 %s283, 1
        %s682 = scalar_lea.sflag [#allocation4], %s681
        %s683 = sand.u32 %s283, 1
        %s684 = scalar_lea.vmem [#allocation3], %s683
        // Predicated region
        $region65: #{tpu_custom_call.1} parent=55 // pred_check
          %p685 = pneg %p267
        $region66: #{tpu_custom_call.1} parent=55 // pred_check_branch
          %687 = sbr.rel (%p685) target = $region68
        $region67: #{tpu_custom_call.1} parent=55 // pred_region
          %s688 = smul.u32 2, %s30
        $region68: #{tpu_custom_call.1} parent=55 // pred_fallthru
          _
        // Predicated region
        $region69: #{tpu_custom_call.1} parent=55 // pred_check
          %p689 = pneg %p293
        $region70: #{tpu_custom_call.1} parent=55 // pred_check_branch
          %691 = sbr.rel (%p689) target = $region72
        $region71: #{tpu_custom_call.1} parent=55 // pred_region
          %693 = vsyncadd %s682, 0
          %s694 = scalar_lea.hbm %s10, %s29
          %s696 = sshll.u32 %s684, 4
          %s697 = int_to_ptr.vmem [resolvable:$true] %s696
          %s698 = sshll.u32 %s694, 4
          %s699 = int_to_ptr.hbm [resolvable:$true] %s698
          %701 = dma.vmem_to_hbm [thread:$0]  %s697, 16, %s699, %s682
        $region72: #{tpu_custom_call.1} parent=55 // pred_fallthru
          _
      $region56: #{tpu_custom_call.1} parent=5 // pred_fallthru
        _
      %p702 = scmp.le.s32.totalorder 2, %s20
      // Predicated region
      $region73: #{tpu_custom_call.1} parent=5 // pred_check
        %p703 = pneg %p702
      $region74: #{tpu_custom_call.1} parent=5 // pred_check_branch
        %705 = sbr.rel (%p703) target = $region76
      $region75: #{tpu_custom_call.1} parent=5 // pred_region
        %s706 = ssub.s32 %s20, 2
        // Predicated region
        $region77: #{tpu_custom_call.1} parent=75 // pred_check
          %p707 = pneg %p273
        $region78: #{tpu_custom_call.1} parent=75 // pred_check_branch
          %709 = sbr.rel (%p707) target = $region80
        $region79: #{tpu_custom_call.1} parent=75 // pred_region
          %s710 = smul.u32 2, %s32
          %p711 = scmp.lt.s32.totalorder %s31, 1
          %s712 = scalar_select %p711, %s31, 1
          %p713 = scmp.lt.s32.totalorder %s710, 7
          %s714 = scalar_select %p713, %s710, 7
          %s715 = smul.addr %s712, 8
          %s716 = sadd.s32 %s714, %s715
          %s717 = smul.addr %s716, 8
          %s718 = scalar_lea.vmem %s9, %s717
        $region80: #{tpu_custom_call.1} parent=75 // pred_fallthru
          _
        // Predicated region
        $region81: #{tpu_custom_call.1} parent=75 // pred_check
          %p719 = pneg %p299
        $region82: #{tpu_custom_call.1} parent=75 // pred_check_branch
          %721 = sbr.rel (%p719) target = $region84
        $region83: #{tpu_custom_call.1} parent=75 // pred_region
          %s722 = sand.u32 %s284, 1
          %s723 = scalar_lea.sflag [#allocation4], %s722
          %s724 = sand.u32 %s284, 1
          %s725 = scalar_lea.vmem [#allocation3], %s724
          %727 = dma.done %s723, 16
        $region84: #{tpu_custom_call.1} parent=75 // pred_fallthru
          _
      $region76: #{tpu_custom_call.1} parent=5 // pred_fallthru
        _
    $region6: #{tpu_custom_call.1} parent=1 // loop_footer
      %s24 = sadd.s32 1, %s20
    $region7: #{tpu_custom_call.1} parent=1 // loop_footer_branch
      %19 = sbr.rel target = $region3
    $region8: #{tpu_custom_call.1} parent=1 // loop_exit
      _
    %728 = vsyncpa [#allocation4], 1
    %s729 = scalar_lea.sflag [#allocation4], 1
    %730 = vsyncpa %s729, 1

</llo_original>
